<compile_context>
chip_gen: v7x
topology: tpu7x:2x2x1
jax: 0.10.0
libtpu: 0.0.40
codegen_flags: <defaults>
</compile_context>

<pallas_src>
import jax
import jax.numpy as jnp
from jax import lax
from jax.experimental import pallas as pl
from jax.experimental.pallas import tpu as pltpu


def _round_up(x, m):
    return (x + m - 1) // m * m


def _cdiv(a, b):
    return (a + b - 1) // b


# --------------------------------------------------------------------------- #
# Kernels
# --------------------------------------------------------------------------- #
def _accumulate_masked_sum(feats_ref, mask_ref, sum_acc, cnt_acc):
    """One (batch_tile, token_tile) pooling step; token axis is the reduction."""
    j = pl.program_id(1)

    @pl.when(j == 0)
    def _init():
        sum_acc[...] = jnp.zeros_like(sum_acc)
        cnt_acc[...] = jnp.zeros_like(cnt_acc)

    f = feats_ref[...]                    # (TILE_B, TILE_N, D), native dtype (f32 / bf16)
    m = mask_ref[...]                     # (TILE_B, TILE_N, 1), same dtype, 0 = drop
    # masked_fill(mask == 0, 0) as a *select*, not a multiply: partial edge
    # blocks of feats read out-of-bounds garbage which must never reach the
    # sum (garbage * 0 could be NaN).  Padded tokens have mask == 0.
    masked = jnp.where(m != 0, f, jnp.zeros_like(f))
    # Upcast per-tile, accumulate in f32.
    # TODO(synk): if the bundle dump shows the (TILE_B, TILE_N, D) select/cast
    # materializing as a VMEM temporary, restructure as an unrolled fori_loop
    # over 8/16-token sublane chunks (review item 8).
    sum_acc[...] += jnp.sum(masked.astype(jnp.float32), axis=1)      # (TILE_B, D)
    # Denominator is sum of the mask values (exact PyTorch semantics).
    cnt_acc[...] += jnp.sum(m.astype(jnp.float32), axis=1)           # (TILE_B, 1)


def _pool_mlp_kernel(feats_ref, mask_ref, w1_ref, b1_ref, w2t_ref, out_ref,
                     sum_acc, cnt_acc):
    """Fused path: masked mean-pool + Linear -> GELU -> Linear, all in Pallas."""
    _accumulate_masked_sum(feats_ref, mask_ref, sum_acc, cnt_acc)

    @pl.when(pl.program_id(1) == pl.num_programs(1) - 1)
    def _finalize():
        # Exact reciprocal so the result tracks the PyTorch reference tightly.
        inv_cnt = pl.reciprocal(cnt_acc[...], approx=False)
        pooled = sum_acc[...] * inv_cnt                               # (TILE_B, D)

        # Linear(dim, 2*dim) on the MXU (weights VMEM-resident).
        h = jnp.dot(pooled, w1_ref[...], preferred_element_type=jnp.float32)
        h = h + b1_ref[...]

        # Dropout(p) -> identity in eval mode.
        # TODO(synk): training-mode stochastic dropout not implemented.

        # GELU, exact erf form (PyTorch default approximate='none').
        h = 0.5 * h * (1.0 + lax.erf(h * 0.7071067811865475))

        # Linear(2*dim, 1) as VPU mul + lane reduce; lane-dense (1,1,TILE_B) store.
        out_ref[0, 0, :] = jnp.sum(h * w2t_ref[...], axis=-1).astype(out_ref.dtype)


def _pool_kernel(feats_ref, mask_ref, pooled_ref, sum_acc, cnt_acc):
    """Split path (large heads): masked mean-pool only; head runs in XLA."""
    _accumulate_masked_sum(feats_ref, mask_ref, sum_acc, cnt_acc)

    @pl.when(pl.program_id(1) == pl.num_programs(1) - 1)
    def _finalize():
        inv_cnt = pl.reciprocal(cnt_acc[...], approx=False)
        pooled_ref[...] = (sum_acc[...] * inv_cnt).astype(pooled_ref.dtype)


# --------------------------------------------------------------------------- #
# Tile / VMEM sizing
# --------------------------------------------------------------------------- #
def _vmem_capacity_bytes():
    """Per-generation physical VMEM; conservative 64 MiB fallback (v7x-safe)."""
    try:
        info = pltpu.get_tpu_info()
        for attr in ("vmem_capacity_bytes", "vmem_bytes", "vmem_size_bytes"):
            v = getattr(info, attr, None)
            if v:
                return int(v)
    except Exception:
        pass
    return 64 * 1024 * 1024


def _resident_vmem_bytes(tile_b, D, H, d_pad, h_pad, fuse_head):
    """Everything that is NOT the token-pipelined feats/mask stream."""
    tb8 = _round_up(max(tile_b, 1), 8)
    b = tb8 * (d_pad + 128) * 4                    # sum_acc + cnt_acc scratch
    if fuse_head:
        b += 2 * _round_up(D, 8) * h_pad * 4       # w1 (constant index map, 2 buffers)
        b += 2 * 2 * 8 * h_pad * 4                 # b1 + w2t (2 buffers each)
        b += tb8 * (d_pad + h_pad) * 4             # finalize temporaries (pooled, h)
        b += 2 * 8 * _round_up(tile_b, 128) * 4    # lane-dense out slab (2 buffers)
    else:
        b += 2 * tb8 * d_pad * 4                   # pooled output block (2 buffers)
        b += tb8 * d_pad * 4                       # finalize temporary
    return b


def _select_tiles(B, N, D, H, feat_isz, fuse_head, vmem_limit):
    # Sublane multiple for the second-to-last block dim (token axis).
    sub = {1: 32, 2: 16}.get(feat_isz, 8)

    # Batch tile.  Keep it lane-dense-friendly (<=128), but guarantee >= 2
    # batch tiles when B >= 16 so both v7x TensorCores get work.
    if B <= 128:
        tile_b = B
        if B >= 16:
            tile_b = _round_up((B + 1) // 2, 8)
    else:
        tile_b = 128

    # Token tile: largest that fits the remaining VMEM (feats + lane-padded
    # mask, double-buffered), after accounting for weights / scratch / temps.
    d_pad = _round_up(D, 128)
    h_pad = _round_up(H, 128)
    margin = 2 * 1024 * 1024
    tile_n = 0
    for _ in range(8):
        resident = _resident_vmem_bytes(tile_b, D, H, d_pad, h_pad, fuse_head)
        budget = vmem_limit - resident - margin
        per_tok = 2 * max(tile_b, 1) * (d_pad * feat_isz + 128 * feat_isz)
        tile_n = budget // per_tok if budget > 0 else 0
        if tile_n >= sub or tile_b <= 8:
            break
        tile_b = max(8, _round_up(tile_b // 2, 8))   # shrink batch tile for huge D

    if tile_n >= N:
        tile_n = N                                   # single token tile (full dim)
    else:
        tile_n = max(sub, (int(tile_n) // sub) * sub)
    return int(tile_b), int(tile_n)


# --------------------------------------------------------------------------- #
# Forward wrapper
# --------------------------------------------------------------------------- #
def predictor_forward(feats, mask, w1, b1, w2, b2, *, force_split=False):
    """Forward pass of `predictor` (eval mode).

    feats: (B, N, D) f32 or bf16 (read in native dtype, never copied in HBM),
    mask:  (B, N) (nonzero = keep) or None,
    w1: (D, 2D), b1: (2D,) or (1, 2D), w2: (2D, 1), b2: scalar / (1, 1).
    Returns (B, 1) f32.
    """
    B, N, D = map(int, feats.shape)
    H = int(w1.shape[1])
    feat_dtype = feats.dtype
    feat_isz = jnp.dtype(feat_dtype).itemsize

    if mask is None:
        mask = jnp.ones((B, N), dtype=feat_dtype)   # plain mean over tokens

    w1 = w1.astype(jnp.float32)
    b1 = jnp.reshape(b1, (1, H)).astype(jnp.float32)
    w2t = jnp.reshape(w2, (1, H)).astype(jnp.float32)
    b2 = jnp.reshape(b2, (1, 1)).astype(jnp.float32)

    # Keep the head in-kernel only while its VMEM residency is small; for big
    # heads do pooling-only in Pallas and the O(B*D*H) head in XLA.
    fuse_head = (not force_split) and (2 * D * H * 4 <= 8 * 1024 * 1024)

    # Per-generation VMEM ceiling: ~96 MiB on v5e/v6e (128 MiB physical),
    # ~48 MiB on v7x (64 MiB physical).
    vmem_cap = _vmem_capacity_bytes()
    vmem_limit = min(vmem_cap * 3 // 4, 100 * 1024 * 1024)

    tile_b, tile_n = _select_tiles(B, N, D, H, feat_isz, fuse_head, vmem_limit)
    num_bt = _cdiv(B, tile_b)
    num_nt = _cdiv(N, tile_n)
    n_pad = num_nt * tile_n

    # Only the tiny mask is padded/cast (B*N elements); padded tokens get mask 0
    # so garbage in partially out-of-bounds feats edge blocks is selected away.
    # Token axis pre-placed on sublanes (no in-kernel relayout); feats dtype so
    # the lane-padded mask tile halves for bf16 inputs.
    # TODO(synk): for pure padding/length masks, passing lengths via SMEM and
    # synthesizing the mask with broadcasted_iota would remove this DMA entirely.
    mask_p = mask.astype(feat_dtype)
    if n_pad != N:
        mask_p = jnp.pad(mask_p, ((0, 0), (0, n_pad - N)))
    mask3 = mask_p[:, :, None]                        # (B, n_pad, 1)

    grid = (num_bt, num_nt)                           # reduction (token) axis last
    feats_spec = pl.BlockSpec((tile_b, tile_n, D), lambda i, j: (i, j, 0))
    mask_spec = pl.BlockSpec((tile_b, tile_n, 1), lambda i, j: (i, j, 0))

    head_flops = (2 * B * D * H + 2 * B * H) if fuse_head else 0
    cost = pl.CostEstimate(
        flops=2 * B * N * D + head_flops,
        transcendentals=(B * H) if fuse_head else 0,
        bytes_accessed=int(feat_isz * B * N * D + feat_isz * B * n_pad
                           + (4 * (D * H + 2 * H) if fuse_head else 0)
                           + 4 * num_bt * tile_b * (1 if fuse_head else D)))

    cparams = pltpu.CompilerParams(
        dimension_semantics=("parallel", "arbitrary"),
        vmem_limit_bytes=int(vmem_limit))

    scratch = [
        pltpu.VMEM((tile_b, D), jnp.float32),         # masked-sum accumulator
        pltpu.VMEM((tile_b, 1), jnp.float32),         # mask-sum (count) accumulator
    ]

    if fuse_head:
        grid_spec = pltpu.PrefetchScalarGridSpec(
            num_scalar_prefetch=0,
            grid=grid,
            in_specs=[
                feats_spec,
                mask_spec,
                pl.BlockSpec((D, H), lambda i, j: (0, 0)),   # weights VMEM-resident
                pl.BlockSpec((1, H), lambda i, j: (0, 0)),
                pl.BlockSpec((1, H), lambda i, j: (0, 0)),
            ],
            out_specs=pl.BlockSpec((1, 1, tile_b), lambda i, j: (i, 0, 0)),
            scratch_shapes=scratch)
        out_tiles = pl.pallas_call(
            _pool_mlp_kernel,
            out_shape=jax.ShapeDtypeStruct((num_bt, 1, tile_b), jnp.float32),
            grid_spec=grid_spec,
            compiler_params=cparams,
            cost_estimate=cost,
        )(feats, mask3, w1, b1, w2t)
        out = out_tiles.reshape(num_bt * tile_b)[:B].reshape(B, 1)
        return out + b2                                # scalar bias folded here

    # Split path: Pallas masked mean-pool + XLA head.
    grid_spec = pltpu.PrefetchScalarGridSpec(
        num_scalar_prefetch=0,
        grid=grid,
        in_specs=[feats_spec, mask_spec],
        out_specs=pl.BlockSpec((tile_b, D), lambda i, j: (i, 0)),
        scratch_shapes=scratch)
    pooled = pl.pallas_call(
        _pool_kernel,
        out_shape=jax.ShapeDtypeStruct((num_bt * tile_b, D), jnp.float32),
        grid_spec=grid_spec,
        compiler_params=cparams,
        cost_estimate=cost,
    )(feats, mask3)[:B]

    h = jnp.dot(pooled, w1, precision=lax.Precision.HIGHEST) + b1
    h = 0.5 * h * (1.0 + lax.erf(h * 0.7071067811865475))     # exact GELU
    return jnp.sum(h * w2t, axis=-1, keepdims=True) + b2


# --------------------------------------------------------------------------- #
# Pure-JAX reference (eval-mode PyTorch forward)
# --------------------------------------------------------------------------- #
def reference_forward(feats, mask, w1, b1, w2, b2):
    masked = jnp.where(mask[:, :, None] != 0, feats, 0.0)
    pooled = jnp.sum(masked, axis=-2) / jnp.sum(mask, axis=-1, keepdims=True)
    h = jnp.dot(pooled, w1, precision=lax.Precision.HIGHEST) + jnp.reshape(b1, (1, -1))
    h = 0.5 * h * (1.0 + lax.erf(h / jnp.sqrt(2.0)))
    return (jnp.sum(h * jnp.reshape(w2, (1, -1)), axis=-1, keepdims=True)
            + jnp.reshape(b2, (1, 1)))


if __name__ == "__main__":
    key = jax.random.PRNGKey(0)
    B, N, D = 2, 8, 32    # batch, tokens, feature dim
    H = 2 * D

    k_feats, k_mask, k_w1, k_b1, k_w2, k_b2 = jax.random.split(key, 6)

    feats = jax.random.normal(k_feats, (B, N, D), dtype=jnp.float32)
    lengths = jnp.array([5, 8], dtype=jnp.int32)
    mask = (jnp.arange(N)[None, :] < lengths[:, None]).astype(jnp.float32)

    bound1 = 1.0 / jnp.sqrt(jnp.float32(D))
    bound2 = 1.0 / jnp.sqrt(jnp.float32(H))
    w1 = jax.random.uniform(k_w1, (D, H), jnp.float32, -bound1, bound1)
    b1 = jax.random.uniform(k_b1, (1, H), jnp.float32, -bound1, bound1)
    w2 = jax.random.uniform(k_w2, (H, 1), jnp.float32, -bound2, bound2)
    b2 = jax.random.uniform(k_b2, (1, 1), jnp.float32, -bound2, bound2)

    ref = reference_forward(feats, mask, w1, b1, w2, b2)

    # 1) fused path: whole forward in one Pallas kernel (small head).
    out = jax.block_until_ready(predictor_forward(feats, mask, w1, b1, w2, b2))
    assert out.shape == (B, 1), out.shape
    assert jnp.allclose(out, ref, atol=2e-5, rtol=2e-5), (out, ref)

    # 2) split path (auto-selected for large heads): Pallas pooling + XLA head.
    out_split = jax.block_until_ready(
        predictor_forward(feats, mask, w1, b1, w2, b2, force_split=True))
    assert jnp.allclose(out_split, ref, atol=2e-5, rtol=2e-5), (out_split, ref)

    # 3) bf16 feats read directly from HBM (no wrapper upcast pass).
    feats_bf = feats.astype(jnp.bfloat16)
    ref_bf = reference_forward(feats_bf.astype(jnp.float32), mask, w1, b1, w2, b2)
    out_bf = jax.block_until_ready(predictor_forward(feats_bf, mask, w1, b1, w2, b2))
    assert jnp.allclose(out_bf, ref_bf, atol=1e-4, rtol=1e-4), (out_bf, ref_bf)

    # 4) mask=None -> plain mean over tokens.
    ref_nm = reference_forward(feats, jnp.ones((B, N), jnp.float32), w1, b1, w2, b2)
    out_nm = jax.block_until_ready(predictor_forward(feats, None, w1, b1, w2, b2))
    assert jnp.allclose(out_nm, ref_nm, atol=2e-5, rtol=2e-5), (out_nm, ref_nm)

    print("KERNEL_OK")
</pallas_src>

<mosaic_0001>
module attributes {stable_mosaic.version = 11 : i64} {
  func.func @_pool_mlp_kernel(%arg0: i32, %arg1: i32, %arg2: memref<2x8x32xf32, #tpu.memory_space<vmem>>, %arg3: memref<2x8x1xf32, #tpu.memory_space<vmem>>, %arg4: memref<32x64xf32, #tpu.memory_space<vmem>>, %arg5: memref<1x64xf32, #tpu.memory_space<vmem>>, %arg6: memref<1x64xf32, #tpu.memory_space<vmem>>, %arg7: memref<1x1x2xf32, #tpu.memory_space<vmem>>, %arg8: memref<2x32xf32, #tpu.memory_space<vmem>>, %arg9: memref<2x1xf32, #tpu.memory_space<vmem>>) attributes {dimension_semantics = [#tpu.dimension_semantics<parallel>, #tpu.dimension_semantics<arbitrary>], iteration_bounds = array<i64: 1, 1>, scalar_prefetch = 0 : i64, scratch_operands = 2 : i64, tpu.core_type = #tpu.core_type<tc>, window_params = [{transform_indices = @transform_0, window_bounds = array<i64: 2, 8, 32>}, {transform_indices = @transform_1, window_bounds = array<i64: 2, 8, 1>}, {pipeline_mode = #tpu.pipeline_mode<synchronous>, transform_indices = @transform_2, window_bounds = array<i64: 32, 64>}, {pipeline_mode = #tpu.pipeline_mode<synchronous>, transform_indices = @transform_3, window_bounds = array<i64: 1, 64>}, {pipeline_mode = #tpu.pipeline_mode<synchronous>, transform_indices = @transform_4, window_bounds = array<i64: 1, 64>}, {transform_indices = @transform_5, window_bounds = array<i64: 1, 1, 2>}]} {
    %c0_i32 = arith.constant 0 : i32
    %0 = arith.cmpi eq, %arg1, %c0_i32 : i32
    %1 = arith.extui %0 : i1 to i32
    %c0_i32_0 = arith.constant 0 : i32
    %2 = arith.cmpi ne, %1, %c0_i32_0 : i32
    scf.if %2 {
      %cst_19 = arith.constant 0.000000e+00 : f32
      %22 = vector.broadcast %cst_19 : f32 to vector<2x32xf32>
      %c0_20 = arith.constant 0 : index
      %c0_21 = arith.constant 0 : index
      %23 = vector.load %arg8[%c0_20, %c0_21] : memref<2x32xf32, #tpu.memory_space<vmem>>, vector<2x32xf32>
      tpu.vector_store %arg8[%c0_20, %c0_21], %22 {strides = array<i32>} : memref<2x32xf32, #tpu.memory_space<vmem>>, vector<2x32xf32>,
      %cst_22 = arith.constant 0.000000e+00 : f32
      %24 = vector.broadcast %cst_22 : f32 to vector<2x1xf32>
      %c0_23 = arith.constant 0 : index
      %c0_24 = arith.constant 0 : index
      %25 = vector.load %arg9[%c0_23, %c0_24] : memref<2x1xf32, #tpu.memory_space<vmem>>, vector<2x1xf32>
      tpu.vector_store %arg9[%c0_23, %c0_24], %24 {strides = array<i32>} : memref<2x1xf32, #tpu.memory_space<vmem>>, vector<2x1xf32>,
    } else {
    }
    %c0 = arith.constant 0 : index
    %c0_1 = arith.constant 0 : index
    %c0_2 = arith.constant 0 : index
    %3 = vector.load %arg2[%c0, %c0_1, %c0_2] : memref<2x8x32xf32, #tpu.memory_space<vmem>>, vector<2x8x32xf32>
    %c0_3 = arith.constant 0 : index
    %c0_4 = arith.constant 0 : index
    %c0_5 = arith.constant 0 : index
    %4 = vector.load %arg3[%c0_3, %c0_4, %c0_5] : memref<2x8x1xf32, #tpu.memory_space<vmem>>, vector<2x8x1xf32>
    %cst = arith.constant 0.000000e+00 : f32
    %5 = vector.broadcast %cst : f32 to vector<2x8x1xf32>
    %6 = arith.cmpf one, %4, %5 : vector<2x8x1xf32>
    %cst_6 = arith.constant 0.000000e+00 : f32
    %7 = vector.broadcast %cst_6 : f32 to vector<2x8x32xf32>
    %8 = vector.shape_cast %6 : vector<2x8x1xi1> to vector<2x8x1xi1>
    %9 = vector.broadcast %8 : vector<2x8x1xi1> to vector<2x8x32xi1>
    %10 = arith.select %9, %3, %7 : vector<2x8x32xi1>, vector<2x8x32xf32>
    %c0_7 = arith.constant 0 : index
    %c0_8 = arith.constant 0 : index
    %11 = vector.load %arg8[%c0_7, %c0_8] : memref<2x32xf32, #tpu.memory_space<vmem>>, vector<2x32xf32>
    %cst_9 = arith.constant dense<0.000000e+00> : vector<2x32xf32>
    %12 = vector.multi_reduction <add>, %10, %cst_9 [1] : vector<2x8x32xf32> to vector<2x32xf32>
    %13 = arith.addf %11, %12 : vector<2x32xf32>
    %c0_10 = arith.constant 0 : index
    %c0_11 = arith.constant 0 : index
    %14 = vector.load %arg8[%c0_10, %c0_11] : memref<2x32xf32, #tpu.memory_space<vmem>>, vector<2x32xf32>
    tpu.vector_store %arg8[%c0_10, %c0_11], %13 {strides = array<i32>} : memref<2x32xf32, #tpu.memory_space<vmem>>, vector<2x32xf32>,
    %c0_12 = arith.constant 0 : index
    %c0_13 = arith.constant 0 : index
    %15 = vector.load %arg9[%c0_12, %c0_13] : memref<2x1xf32, #tpu.memory_space<vmem>>, vector<2x1xf32>
    %cst_14 = arith.constant dense<0.000000e+00> : vector<2x1xf32>
    %16 = vector.multi_reduction <add>, %4, %cst_14 [1] : vector<2x8x1xf32> to vector<2x1xf32>
    %17 = arith.addf %15, %16 : vector<2x1xf32>
    %c0_15 = arith.constant 0 : index
    %c0_16 = arith.constant 0 : index
    %18 = vector.load %arg9[%c0_15, %c0_16] : memref<2x1xf32, #tpu.memory_space<vmem>>, vector<2x1xf32>
    tpu.vector_store %arg9[%c0_15, %c0_16], %17 {strides = array<i32>} : memref<2x1xf32, #tpu.memory_space<vmem>>, vector<2x1xf32>,
    %c0_i32_17 = arith.constant 0 : i32
    %19 = arith.cmpi eq, %arg1, %c0_i32_17 : i32
    %20 = arith.extui %19 : i1 to i32
    %c0_i32_18 = arith.constant 0 : i32
    %21 = arith.cmpi ne, %20, %c0_i32_18 : i32
    scf.if %21 {
      %c0_19 = arith.constant 0 : index
      %c0_20 = arith.constant 0 : index
      %22 = vector.load %arg9[%c0_19, %c0_20] : memref<2x1xf32, #tpu.memory_space<vmem>>, vector<2x1xf32>
      %23 = tpu.reciprocal %22 : vector<2x1xf32> -> vector<2x1xf32>
      %c0_21 = arith.constant 0 : index
      %c0_22 = arith.constant 0 : index
      %24 = vector.load %arg8[%c0_21, %c0_22] : memref<2x32xf32, #tpu.memory_space<vmem>>, vector<2x32xf32>
      %25 = vector.broadcast %23 : vector<2x1xf32> to vector<2x32xf32>
      %26 = arith.mulf %24, %25 : vector<2x32xf32>
      %c0_23 = arith.constant 0 : index
      %c0_24 = arith.constant 0 : index
      %27 = vector.load %arg4[%c0_23, %c0_24] : memref<32x64xf32, #tpu.memory_space<vmem>>, vector<32x64xf32>
      %cst_25 = arith.constant dense<0.000000e+00> : vector<2x64xf32>
      %28 = tpu.matmul %26, %27, %cst_25 {dimension_numbers = #tpu.dot_dimension_numbers<[1], [0], [0], [1], [0, 0, 1, 1], [], []>} : vector<2x32xf32>, vector<32x64xf32>, vector<2x64xf32> -> vector<2x64xf32>
      %c0_26 = arith.constant 0 : index
      %c0_27 = arith.constant 0 : index
      %29 = vector.load %arg5[%c0_26, %c0_27] : memref<1x64xf32, #tpu.memory_space<vmem>>, vector<1x64xf32>
      %30 = vector.broadcast %29 : vector<1x64xf32> to vector<2x64xf32>
      %31 = arith.addf %28, %30 : vector<2x64xf32>
      %cst_28 = arith.constant 5.000000e-01 : f32
      %32 = vector.broadcast %cst_28 : f32 to vector<2x64xf32>
      %33 = arith.mulf %32, %31 : vector<2x64xf32>
      %cst_29 = arith.constant 0.707106769 : f32
      %34 = vector.broadcast %cst_29 : f32 to vector<2x64xf32>
      %35 = arith.mulf %31, %34 : vector<2x64xf32>
      %36 = math.erf %35 : vector<2x64xf32>
      %cst_30 = arith.constant 1.000000e+00 : f32
      %37 = vector.broadcast %cst_30 : f32 to vector<2x64xf32>
      %38 = arith.addf %37, %36 : vector<2x64xf32>
      %39 = arith.mulf %33, %38 : vector<2x64xf32>
      %c0_31 = arith.constant 0 : index
      %c0_32 = arith.constant 0 : index
      %40 = vector.load %arg6[%c0_31, %c0_32] : memref<1x64xf32, #tpu.memory_space<vmem>>, vector<1x64xf32>
      %41 = vector.broadcast %40 : vector<1x64xf32> to vector<2x64xf32>
      %42 = arith.mulf %39, %41 : vector<2x64xf32>
      %cst_33 = arith.constant dense<0.000000e+00> : vector<2xf32>
      %43 = vector.multi_reduction <add>, %42, %cst_33 [1] : vector<2x64xf32> to vector<2xf32>
      %c0_34 = arith.constant 0 : index
      %c0_35 = arith.constant 0 : index
      %c0_36 = arith.constant 0 : index
      %44 = vector.load %arg7[%c0_34, %c0_35, %c0_36] : memref<1x1x2xf32, #tpu.memory_space<vmem>>, vector<1x1x2xf32>
      %45 = vector.shape_cast %44 : vector<1x1x2xf32> to vector<2xf32>
      %46 = vector.shape_cast %43 : vector<2xf32> to vector<1x1x2xf32>
      tpu.vector_store %arg7[%c0_34, %c0_35, %c0_36], %46 {strides = array<i32>} : memref<1x1x2xf32, #tpu.memory_space<vmem>>, vector<1x1x2xf32>,
    } else {
    }
    return
  }
  func.func @transform_0(%arg0: i32, %arg1: i32) -> (i32, i32, i32) {
    %c0_i32 = arith.constant 0 : i32
    %c0_i32_0 = arith.constant 0 : i32
    return %arg0, %arg1, %c0_i32 : i32, i32, i32
  }
  func.func @transform_1(%arg0: i32, %arg1: i32) -> (i32, i32, i32) {
    %c0_i32 = arith.constant 0 : i32
    %c0_i32_0 = arith.constant 0 : i32
    return %arg0, %arg1, %c0_i32 : i32, i32, i32
  }
  func.func @transform_2(%arg0: i32, %arg1: i32) -> (i32, i32) {
    %c0_i32 = arith.constant 0 : i32
    %c0_i32_0 = arith.constant 0 : i32
    %c0_i32_1 = arith.constant 0 : i32
    return %c0_i32, %c0_i32_0 : i32, i32
  }
  func.func @transform_3(%arg0: i32, %arg1: i32) -> (i32, i32) {
    %c0_i32 = arith.constant 0 : i32
    %c0_i32_0 = arith.constant 0 : i32
    %c0_i32_1 = arith.constant 0 : i32
    return %c0_i32, %c0_i32_0 : i32, i32
  }
  func.func @transform_4(%arg0: i32, %arg1: i32) -> (i32, i32) {
    %c0_i32 = arith.constant 0 : i32
    %c0_i32_0 = arith.constant 0 : i32
    %c0_i32_1 = arith.constant 0 : i32
    return %c0_i32, %c0_i32_0 : i32, i32
  }
  func.func @transform_5(%arg0: i32, %arg1: i32) -> (i32, i32, i32) {
    %c0_i32 = arith.constant 0 : i32
    %c0_i32_0 = arith.constant 0 : i32
    %c0_i32_1 = arith.constant 0 : i32
    return %arg0, %c0_i32, %c0_i32_0 : i32, i32, i32
  }
}

</mosaic_0001>

<llo_original>
// kernel: tpu_custom_call.1
$region0: #{tpu_custom_call.1}
  #allocation0 [shape = 'u32[]', space=smem, size = 0x4, offset = 0x4, fixed_abs, tag = 'smem constant byte address 0x4 - core index']
  #allocation1 [shape = 'u32[144,128]{1,0:T(1,128)}', space=vmem, size = 0x12000, scoped, tag = 'internal scratch']
  #allocation2 [shape = 'f32[2,32]{1,0:T(2,128)}', space=vmem, size = 0x400, scoped, tag = 'scratch operand']
  #allocation3 [shape = 'f32[2,1]{1,0:T(2,128)}', space=vmem, size = 0x400, scoped, tag = 'scratch operand']
  %s0 = inlined_call_operand.vmem [shape: f32[2,8,32], index: 0, kind: input, shape index: {}]
  %s1 = inlined_call_operand.vmem [shape: f32[2,8,1], index: 1, kind: input, shape index: {}]
  %s2 = inlined_call_operand.hbm [shape: f32[32,64], index: 2, kind: input, shape index: {}]
  %s3 = inlined_call_operand.vmem [shape: f32[1,64], index: 3, kind: input, shape index: {}]
  %s4 = inlined_call_operand.vmem [shape: f32[1,64], index: 4, kind: input, shape index: {}]
  %s5 = inlined_call_operand.hbm [shape: f32[1,1,2], index: 5, kind: output, shape index: {}]
  %s6 = sld [smem:[#allocation0]]
  $region42: #{tpu_custom_call.1} parent=0
    _
  %s8 = ssub.s32 1, %s6
  %s9 = scalar_select 0, %s8, %s6
  $region1: #{tpu_custom_call.1} parent=0
    #allocation4 [shape = 'u8[16384]{0}', space=vmem, size = 0x4000, scoped, tag = 'input window, operand 2, single buffered']
    #allocation5 [shape = 's32[1]{0}', space=sflag, size = 0x4, scoped, tag = 'scoped memory for tpu_custom_call.1']
    #allocation6 [shape = 's32[1]{0}', space=sflag, size = 0x4, scoped, tag = 'scoped memory for tpu_custom_call.1']
    #allocation7 [shape = 'u8[512]{0}', space=vmem, size = 0x400, scoped, tag = 'output window, operand 0, single buffered']
    %10 = vsyncpa [#allocation5], 0
    %11 = vsyncpa [#allocation6], 0
    // Predicated region
    $region2: #{tpu_custom_call.1} parent=1 // pred_check
      _
    $region3: #{tpu_custom_call.1} parent=1 // pred_check_branch
      %13 = sbr.rel (0) target = $region5
    $region4: #{tpu_custom_call.1} parent=1 // pred_region
      _
    $region5: #{tpu_custom_call.1} parent=1 // pred_fallthru
      _
    // Predicated region
    $region6: #{tpu_custom_call.1} parent=1 // pred_check
      _
    $region7: #{tpu_custom_call.1} parent=1 // pred_check_branch
      %15 = sbr.rel (0) target = $region9
    $region8: #{tpu_custom_call.1} parent=1 // pred_region
      _
    $region9: #{tpu_custom_call.1} parent=1 // pred_fallthru
      _
    // Predicated region
    $region10: #{tpu_custom_call.1} parent=1 // pred_check
      _
    $region11: #{tpu_custom_call.1} parent=1 // pred_check_branch
      %17 = sbr.rel (0) target = $region13
    $region12: #{tpu_custom_call.1} parent=1 // pred_region
      %s19 = ssub.s32 512, 512
      %20 = vsyncadd [#allocation5], %s19
      %s21 = sshll.u32 [#allocation4], 4
      %s22 = int_to_ptr.vmem [resolvable:$true] %s21
      %27 = dma.hbm_to_vmem [thread:$0]  %s2, 512, %s22, [#allocation5], 128, 128, 8
    $region13: #{tpu_custom_call.1} parent=1 // pred_fallthru
      _
    // Predicated region
    $region14: #{tpu_custom_call.1} parent=1 // pred_check
      _
    $region15: #{tpu_custom_call.1} parent=1 // pred_check_branch
      %29 = sbr.rel (0) target = $region17
    $region16: #{tpu_custom_call.1} parent=1 // pred_region
      _
    $region17: #{tpu_custom_call.1} parent=1 // pred_fallthru
      _
    // Predicated region
    $region18: #{tpu_custom_call.1} parent=1 // pred_check
      _
    $region19: #{tpu_custom_call.1} parent=1 // pred_check_branch
      %31 = sbr.rel (0) target = $region21
    $region20: #{tpu_custom_call.1} parent=1 // pred_region
      _
    $region21: #{tpu_custom_call.1} parent=1 // pred_fallthru
      _
    // Predicated region
    $region22: #{tpu_custom_call.1} parent=1 // pred_check
      _
    $region23: #{tpu_custom_call.1} parent=1 // pred_check_branch
      %33 = sbr.rel (0) target = $region25
    $region24: #{tpu_custom_call.1} parent=1 // pred_region
      %34 = dma.done [#allocation5], 512
    $region25: #{tpu_custom_call.1} parent=1 // pred_fallthru
      _
    %p35 = scmp.eq.s32.totalorder 0, 0
    // Predicated region
    $region26: #{tpu_custom_call.1} parent=1 // pred_check
      %p36 = pneg %p35
    $region27: #{tpu_custom_call.1} parent=1 // pred_check_branch
      %38 = sbr.rel (%p36) target = $region29
    $region28: #{tpu_custom_call.1} parent=1 // pred_region
      %vm39 = vcmask 254976
      %40 = vst.msk [vmem:[#allocation2] sm:$0x3] %vm39, 0.0
      %vm41 = vcmask 1024
      %42 = vst.msk [vmem:[#allocation3] sm:$0x3] %vm41, 0.0
    $region29: #{tpu_custom_call.1} parent=1 // pred_fallthru
      _
    %v43 = vld [vmem:[%s0] sm:$0xff]
    %v44 = vld [vmem:[%s0 + $0x8] sm:$0xff]
    %v45 = vld [vmem:[%s1] sm:$0xff]
    %v46 = vld [vmem:[%s1 + $0x8] sm:$0xff]
    %vm47 = vcmp.ne.f32.partialorder %v45, 0.0
    %vm48 = vcmp.ne.f32.partialorder %v46, 0.0
    %v49 = vsel %vm47, 1, 0
    %v50 = vsel %vm48, 1, 0
    %51 = vset.pattern.permute.xlu0 0
    %52 = vperm.xlu0 %51, %v49
    %v53 = vpop.permute.xlu0 %52
    %54 = vset.pattern.permute.xlu0 0
    %55 = vperm.xlu0 %54, %v50
    %v56 = vpop.permute.xlu0 %55
    %vm57 = vcmp.eq.s32.totalorder %v53, 1
    %vm58 = vcmp.eq.s32.totalorder %v56, 1
    %v59 = vsel %vm57, %v43, 0.0
    %v60 = vsel %vm58, %v44, 0.0
    %v61 = vld [vmem:[#allocation2] sm:$0x3]
    %vm62 = vcmask 261120
    %v63 = vsel %vm62, %v59, 0.0
    %v64 = vrot.slane %v63, 4
    %v65 = vadd.f32 %v63, %v64
    %v66 = vrot.slane %v65, 2
    %v67 = vadd.f32 %v65, %v66
    %v68 = vrot.slane %v67, 1
    %v69 = vadd.f32 %v67, %v68
    %v70 = vsel %vm62, %v60, 0.0
    %v71 = vrot.slane %v70, 4
    %v72 = vadd.f32 %v70, %v71
    %v73 = vrot.slane %v72, 2
    %v74 = vadd.f32 %v72, %v73
    %v75 = vrot.slane %v74, 1
    %v76 = vadd.f32 %v74, %v75
    %vm79 = vcmask 1041409
    %v80 = vsel %vm79, %v76, %v69
    %v82 = vadd.f32 %v61, %v80
    %vm83 = vcmask 254976
    %84 = vst.msk [vmem:[#allocation2] sm:$0x3] %vm83, %v82
    %v85 = vld [vmem:[#allocation3] sm:$0x3]
    %vm86 = vcmask 7168
    %v87 = vsel %vm86, %v45, 0.0
    %v88 = vrot.slane %v87, 4
    %v89 = vadd.f32 %v87, %v88
    %v90 = vrot.slane %v89, 2
    %v91 = vadd.f32 %v89, %v90
    %v92 = vrot.slane %v91, 1
    %v93 = vadd.f32 %v91, %v92
    %v94 = vsel %vm86, %v46, 0.0
    %v95 = vrot.slane %v94, 4
    %v96 = vadd.f32 %v94, %v95
    %v97 = vrot.slane %v96, 2
    %v98 = vadd.f32 %v96, %v97
    %v99 = vrot.slane %v98, 1
    %v100 = vadd.f32 %v98, %v99
    %v103 = vsel %vm79, %v100, %v93
    %v105 = vadd.f32 %v85, %v103
    %vm106 = vcmask 1024
    %107 = vst.msk [vmem:[#allocation3] sm:$0x3] %vm106, %v105
    // Predicated region
    $region30: #{tpu_custom_call.1} parent=1 // pred_check
      %p108 = pneg %p35
    $region31: #{tpu_custom_call.1} parent=1 // pred_check_branch
      %110 = sbr.rel (%p108) target = $region33
    $region32: #{tpu_custom_call.1} parent=1 // pred_region
      %v111 = vld [vmem:[#allocation3] sm:$0x3]
      %v112 = vrcp.pop %v111
      %v113 = vld [vmem:[#allocation2] sm:$0x3]
      %115 = vset.pattern.permute.xlu0 0
      %116 = vperm.xlu0 %115, %v112
      %v117 = vpop.permute.xlu0 %116
      %v119 = vmul.f32 %v113, %v117
      %v120 = vld [vmem:[#allocation4] sm:$0xff]
      %v121 = vld [vmem:[#allocation4 + $0x8] sm:$0xff]
      %v122 = vld [vmem:[#allocation4 + $0x10] sm:$0xff]
      %v123 = vld [vmem:[#allocation4 + $0x18] sm:$0xff]
      %v124 = vld [vmem:[%s3] sm:$0x1]
      %v126 = vlaneseq
      %v127 = vshrl.u32 %v126, 7
      %v128 = vsub.s32 0, %v127
      %v129 = vrot.slane %v124, %v128
      %v132 = vsel %vm62, %v119, 0
      %134 = vmatprep.subr.mxu0 0.0
      %135 = vmatpush1.msra.mxu0 %v120
      %136 = vmatprep.subr.mxu0 0.0
      %137 = vmatpush1.msra.mxu0 %v121
      %138 = vmatprep.subr.mxu0 0.0
      %139 = vmatpush1.msra.mxu0 %v122
      %140 = vmatprep.subr.mxu0 0.0
      %141 = vmatpush1.msra.mxu0 %v123
      %142 = vmatprep.subr.mxu0 0.0
      %143 = vmatpush1.msra.mxu0 0.0
      %144 = vmatprep.subr.mxu0 0.0
      %145 = vmatpush1.msra.mxu0 0.0
      %146 = vmatprep.subr.mxu0 0.0
      %147 = vmatpush1.msra.mxu0 0.0
      %148 = vmatprep.subr.mxu0 0.0
      %149 = vmatpush1.msra.mxu0 0.0
      %150 = vmatprep.subr.mxu0 0.0
      %151 = vmatpush1.msra.mxu0 0.0
      %152 = vmatprep.subr.mxu0 0.0
      %153 = vmatpush1.msra.mxu0 0.0
      %154 = vmatprep.subr.mxu0 0.0
      %155 = vmatpush1.msra.mxu0 0.0
      %156 = vmatprep.subr.mxu0 0.0
      %157 = vmatpush1.msra.mxu0 0.0
      %158 = vmatprep.subr.mxu0 0.0
      %159 = vmatpush1.msra.mxu0 0.0
      %160 = vmatprep.subr.mxu0 0.0
      %161 = vmatpush1.msra.mxu0 0.0
      %162 = vmatprep.subr.mxu0 0.0
      %163 = vmatpush1.msra.mxu0 0.0
      %164 = vmatprep.subr.mxu0 0.0
      %165 = vmatpush1.msra.mxu0 0.0
      %166 = vmatprep.subr.mxu0 0.0
      %167 = vmatpush1.msra.mxu0 0.0
      %168 = vmatprep.subr.mxu0 0.0
      %169 = vmatpush1.msra.mxu0 0.0
      %170 = vmatprep.subr.mxu0 0.0
      %171 = vmatpush1.msra.mxu0 0.0
      %172 = vmatprep.subr.mxu0 0.0
      %173 = vmatpush1.msra.mxu0 0.0
      %174 = vmatprep.subr.mxu0 0.0
      %175 = vmatpush1.msra.mxu0 0.0
      %176 = vmatprep.subr.mxu0 0.0
      %177 = vmatpush1.msra.mxu0 0.0
      %178 = vmatprep.subr.mxu0 0.0
      %179 = vmatpush1.msra.mxu0 0.0
      %180 = vmatprep.subr.mxu0 0.0
      %181 = vmatpush1.msra.mxu0 0.0
      %182 = vmatprep.subr.mxu0 0.0
      %183 = vmatpush1.msra.mxu0 0.0
      %184 = vmatprep.subr.mxu0 0.0
      %185 = vmatpush1.msra.mxu0 0.0
      %186 = vmatprep.subr.mxu0 0.0
      %187 = vmatpush1.msra.mxu0 0.0
      %188 = vmatprep.subr.mxu0 0.0
      %189 = vmatpush1.msra.mxu0 0.0
      %190 = vmatprep.subr.mxu0 0.0
      %191 = vmatpush1.msra.mxu0 0.0
      %192 = vmatprep.subr.mxu0 0.0
      %193 = vmatpush1.msra.mxu0 0.0
      %194 = vmatprep.subr.mxu0 0.0
      %195 = vmatpush1.msra.mxu0 0.0
      %196 = vmatprep.subr.mxu0 0.0
      %197 = vmatpush1.msra.mxu0 0.0
      %198 = vmatprep.mubr.f32.mxu0 0.0
      %199 = vmatmul.mubr.f32.gmra.mrb[0].mxu0 %v132
      %v200 = vpop.f32.mrb[0].mxu0
      %v201 = vadd.f32 %v129, %v200
      %v202 = vpop.f32.mrb[0].mxu0
      %203 = vdwg.mxu0
      %v204 = vmul.f32 %v201, 0.5
      %v205 = vmul.f32 %v201, 0.70710677
      %v206 = verf.f32.pop %v205
      %v207 = vadd.f32 %v206, 1.0
      %v208 = vmul.f32 %v204, %v207
      %v209 = vld [vmem:[%s4] sm:$0x1]
      %v211 = vlaneseq
      %v212 = vshrl.u32 %v211, 7
      %v213 = vsub.s32 0, %v212
      %v214 = vrot.slane %v209, %v213
      %v216 = vmul.f32 %v208, %v214
      %vm217 = vcmask 517120
      %v218 = vsel %vm217, %v216, 0.0
      %219 = vadd.xlane.f32.xlu0 %v218
      %v220 = vpop.xlane.xlu0 %219
      %v222 = vlaneseq
      %v223 = vand.u32 %v222, 127
      %v224 = vlaneseq
      %v225 = vshrl.u32 %v224, 7
      %v226 = vsub.s32 %v223, %v225
      %v227 = vrot.slane %v220, %v226
      %vm229 = vcmask 8192
      %230 = vst.msk [vmem:[#allocation7] sm:$0x1] %vm229, %v227
    $region33: #{tpu_custom_call.1} parent=1 // pred_fallthru
      _
    // Predicated region
    $region34: #{tpu_custom_call.1} parent=1 // pred_check
      _
    $region35: #{tpu_custom_call.1} parent=1 // pred_check_branch
      %232 = sbr.rel (0) target = $region37
    $region36: #{tpu_custom_call.1} parent=1 // pred_region
      %s234 = ssub.s32 16, 16
      %235 = vsyncadd [#allocation6], %s234
      %s237 = sshll.u32 [#allocation7], 4
      %s238 = int_to_ptr.vmem [resolvable:$true] %s237
      %240 = dma.vmem_to_hbm [thread:$0]  %s238, 16, %s5, [#allocation6]
    $region37: #{tpu_custom_call.1} parent=1 // pred_fallthru
      _
    // Predicated region
    $region38: #{tpu_custom_call.1} parent=1 // pred_check
      _
    $region39: #{tpu_custom_call.1} parent=1 // pred_check_branch
      %242 = sbr.rel (0) target = $region41
    $region40: #{tpu_custom_call.1} parent=1 // pred_region
      %243 = dma.done [#allocation6], 16
    $region41: #{tpu_custom_call.1} parent=1 // pred_fallthru
      _
    %244 = vsyncpa [#allocation5], 1
    %245 = vsyncpa [#allocation6], 1

</llo_original>
